<compile_context>
chip_gen: v6e
topology: v6e:2x2x1
jax: 0.10.0
libtpu: 0.0.40
codegen_flags: <defaults>
</compile_context>

<pallas_src>
import functools

import jax
import jax.numpy as jnp
from jax import lax
from jax.experimental import pallas as pl
from jax.experimental.pallas import tpu as pltpu


def _triplet_tile_kernel(q_ref, p_ref, n_ref, out_ref, *,
                         margin: float, eps: float, batch: int, block_rows: int,
                         needs_mask: bool):
    # (TB, D) tiles resident in VMEM; upcast in-kernel (inputs may be bf16).
    q = q_ref[...].astype(jnp.float32)
    p = p_ref[...].astype(jnp.float32)
    n = n_ref[...].astype(jnp.float32)

    # Feature-axis (dim=1) reductions; keepdims -> TPU-friendly 2D (TB, 1).
    dot_qp = jnp.sum(q * p, axis=1, keepdims=True)
    dot_qn = jnp.sum(q * n, axis=1, keepdims=True)
    nq2 = jnp.sum(q * q, axis=1, keepdims=True)
    np2 = jnp.sum(p * p, axis=1, keepdims=True)
    nn2 = jnp.sum(n * n, axis=1, keepdims=True)

    # cos = dot / sqrt(max(nA*nB, eps^2)) == dot * rsqrt(max(nA*nB, eps^2))  (EUP)
    inv_qp = lax.rsqrt(jnp.maximum(nq2 * np2, eps * eps))
    inv_qn = lax.rsqrt(jnp.maximum(nq2 * nn2, eps * eps))
    cos_qp = dot_qp * inv_qp
    cos_qn = dot_qn * inv_qn

    # (1 - cos_qp) - (1 - cos_qn) + margin == cos_qn - cos_qp + margin
    per_sample = jnp.maximum(cos_qn - cos_qp + margin, 0.0)       # (TB, 1)

    if needs_mask:
        # Mask ragged-tail rows of the last tile (padded rows would otherwise
        # each contribute `margin` to the sum).
        row_ids = lax.broadcasted_iota(jnp.int32, per_sample.shape, 0)
        valid = (pl.program_id(0) * block_rows + row_ids) < batch
        per_sample = jnp.where(valid, per_sample, 0.0)

    # One partial sum per tile; mean is finished in the wrapper.
    out_ref[0, 0] = jnp.sum(per_sample)


def _pick_block_rows(batch: int, feat: int, itemsize: int) -> int:
    # 3 inputs x 2 pipeline buffers x TB x D x itemsize kept under ~12 MiB so
    # the smallest scoped-VMEM default (v5e: 16 MiB) is always respected.
    budget_bytes = 12 * 1024 * 1024
    per_row = 3 * 2 * max(feat, 1) * itemsize
    tb = budget_bytes // per_row
    tb = max(8, min(1024, (tb // 8) * 8))
    if batch <= tb:
        return batch            # single tile; block dims == full array dims
    return tb


def triplet_contrastive_loss(x_q: jax.Array, x_pos: jax.Array, x_neg: jax.Array,
                             margin: float = 1.0, eps: float = 1e-8,
                             block_rows: int | None = None) -> jax.Array:
    assert x_q.shape == x_pos.shape == x_neg.shape and x_q.ndim == 2
    B, D = x_q.shape
    if block_rows is None:
        block_rows = _pick_block_rows(B, D, jnp.dtype(x_q.dtype).itemsize)
    num_tiles = pl.cdiv(B, block_rows)
    needs_mask = (B % block_rows) != 0

    kernel = functools.partial(_triplet_tile_kernel, margin=margin, eps=eps,
                               batch=B, block_rows=block_rows,
                               needs_mask=needs_mask)

    in_spec = pl.BlockSpec((block_rows, D), lambda i: (i, 0))
    partials = pl.pallas_call(
        kernel,
        out_shape=jax.ShapeDtypeStruct((num_tiles, 1), jnp.float32),
        grid=(num_tiles,),
        in_specs=[in_spec, in_spec, in_spec],
        out_specs=pl.BlockSpec((1, 1), lambda i: (i, 0),
                               memory_space=pltpu.MemorySpace.SMEM),
        compiler_params=pltpu.CompilerParams(
            dimension_semantics=("parallel",)),
    )(x_q, x_pos, x_neg)

    # reduction='mean' over the true batch size.
    return jnp.sum(partials) / jnp.float32(B)


def _reference_loss(x_q, x_pos, x_neg, margin=1.0, eps=1e-8):
    # Pure-JAX reference matching torch semantics, for sanity checking.
    def cos(a, b):
        a = a.astype(jnp.float32)
        b = b.astype(jnp.float32)
        num = jnp.sum(a * b, axis=1)
        den = jnp.sqrt(jnp.maximum(jnp.sum(a * a, axis=1) * jnp.sum(b * b, axis=1),
                                   eps * eps))
        return num / den
    d_ap = 1.0 - cos(x_q, x_pos)
    d_an = 1.0 - cos(x_q, x_neg)
    return jnp.mean(jnp.maximum(d_ap - d_an + margin, 0.0))


if __name__ == "__main__":
    key = jax.random.PRNGKey(0)

    # Test 1: small, single-tile path (B=8, D=32).
    k1, k2, k3 = jax.random.split(key, 3)
    B, D = 8, 32
    x_q = jax.random.normal(k1, (B, D), dtype=jnp.float32)
    x_pos = jax.random.normal(k2, (B, D), dtype=jnp.float32)
    x_neg = jax.random.normal(k3, (B, D), dtype=jnp.float32)

    loss = jax.block_until_ready(triplet_contrastive_loss(x_q, x_pos, x_neg))
    ref = _reference_loss(x_q, x_pos, x_neg)
    assert jnp.allclose(loss, ref, atol=1e-5, rtol=1e-5), (loss, ref)

    # Test 2: ragged-tail path (B=13 forced into 8-row tiles -> masked last tile).
    k4, k5, k6 = jax.random.split(jax.random.PRNGKey(1), 3)
    B2, D2 = 13, 32
    y_q = jax.random.normal(k4, (B2, D2), dtype=jnp.float32)
    y_pos = jax.random.normal(k5, (B2, D2), dtype=jnp.float32)
    y_neg = jax.random.normal(k6, (B2, D2), dtype=jnp.float32)

    loss2 = jax.block_until_ready(
        triplet_contrastive_loss(y_q, y_pos, y_neg, block_rows=8))
    ref2 = _reference_loss(y_q, y_pos, y_neg)
    assert jnp.allclose(loss2, ref2, atol=1e-5, rtol=1e-5), (loss2, ref2)

    # Test 3: bf16 inputs (upcast happens in-kernel), multi-tile aligned path.
    k7, k8, k9 = jax.random.split(jax.random.PRNGKey(2), 3)
    B3, D3 = 16, 64
    z_q = jax.random.normal(k7, (B3, D3), dtype=jnp.bfloat16)
    z_pos = jax.random.normal(k8, (B3, D3), dtype=jnp.bfloat16)
    z_neg = jax.random.normal(k9, (B3, D3), dtype=jnp.bfloat16)

    loss3 = jax.block_until_ready(
        triplet_contrastive_loss(z_q, z_pos, z_neg, block_rows=8))
    ref3 = _reference_loss(z_q, z_pos, z_neg)
    assert jnp.allclose(loss3, ref3, atol=1e-4, rtol=1e-4), (loss3, ref3)

    print("KERNEL_OK")
</pallas_src>

<mosaic_0001>
module attributes {stable_mosaic.version = 11 : i64} {
  func.func @_triplet_tile_kernel(%arg0: i32, %arg1: memref<8x32xf32, #tpu.memory_space<vmem>>, %arg2: memref<8x32xf32, #tpu.memory_space<vmem>>, %arg3: memref<8x32xf32, #tpu.memory_space<vmem>>, %arg4: memref<1x1xf32, #tpu.memory_space<smem>>) attributes {dimension_semantics = [#tpu.dimension_semantics<parallel>], iteration_bounds = array<i64: 1>, scalar_prefetch = 0 : i64, scratch_operands = 0 : i64, tpu.core_type = #tpu.core_type<tc>, window_params = [{transform_indices = @transform_0, window_bounds = array<i64: 8, 32>}, {transform_indices = @transform_1, window_bounds = array<i64: 8, 32>}, {transform_indices = @transform_2, window_bounds = array<i64: 8, 32>}, {transform_indices = @transform_3, window_bounds = array<i64: 1, 1>}]} {
    %c0 = arith.constant 0 : index
    %c0_0 = arith.constant 0 : index
    %0 = vector.load %arg1[%c0, %c0_0] : memref<8x32xf32, #tpu.memory_space<vmem>>, vector<8x32xf32>
    %c0_1 = arith.constant 0 : index
    %c0_2 = arith.constant 0 : index
    %1 = vector.load %arg2[%c0_1, %c0_2] : memref<8x32xf32, #tpu.memory_space<vmem>>, vector<8x32xf32>
    %c0_3 = arith.constant 0 : index
    %c0_4 = arith.constant 0 : index
    %2 = vector.load %arg3[%c0_3, %c0_4] : memref<8x32xf32, #tpu.memory_space<vmem>>, vector<8x32xf32>
    %3 = arith.mulf %0, %1 : vector<8x32xf32>
    %cst = arith.constant dense<0.000000e+00> : vector<8xf32>
    %4 = vector.multi_reduction <add>, %3, %cst [1] : vector<8x32xf32> to vector<8xf32>
    %5 = vector.shape_cast %4 : vector<8xf32> to vector<8x1xf32>
    %6 = arith.mulf %0, %2 : vector<8x32xf32>
    %cst_5 = arith.constant dense<0.000000e+00> : vector<8xf32>
    %7 = vector.multi_reduction <add>, %6, %cst_5 [1] : vector<8x32xf32> to vector<8xf32>
    %8 = vector.shape_cast %7 : vector<8xf32> to vector<8x1xf32>
    %9 = arith.mulf %0, %0 : vector<8x32xf32>
    %cst_6 = arith.constant dense<0.000000e+00> : vector<8xf32>
    %10 = vector.multi_reduction <add>, %9, %cst_6 [1] : vector<8x32xf32> to vector<8xf32>
    %11 = vector.shape_cast %10 : vector<8xf32> to vector<8x1xf32>
    %12 = arith.mulf %1, %1 : vector<8x32xf32>
    %cst_7 = arith.constant dense<0.000000e+00> : vector<8xf32>
    %13 = vector.multi_reduction <add>, %12, %cst_7 [1] : vector<8x32xf32> to vector<8xf32>
    %14 = vector.shape_cast %13 : vector<8xf32> to vector<8x1xf32>
    %15 = arith.mulf %2, %2 : vector<8x32xf32>
    %cst_8 = arith.constant dense<0.000000e+00> : vector<8xf32>
    %16 = vector.multi_reduction <add>, %15, %cst_8 [1] : vector<8x32xf32> to vector<8xf32>
    %17 = vector.shape_cast %16 : vector<8xf32> to vector<8x1xf32>
    %18 = arith.mulf %11, %14 : vector<8x1xf32>
    %cst_9 = arith.constant 1.000000e-16 : f32
    %19 = vector.broadcast %cst_9 : f32 to vector<8x1xf32>
    %20 = arith.maximumf %18, %19 : vector<8x1xf32>
    %21 = math.rsqrt %20 : vector<8x1xf32>
    %22 = arith.mulf %11, %17 : vector<8x1xf32>
    %cst_10 = arith.constant 1.000000e-16 : f32
    %23 = vector.broadcast %cst_10 : f32 to vector<8x1xf32>
    %24 = arith.maximumf %22, %23 : vector<8x1xf32>
    %25 = math.rsqrt %24 : vector<8x1xf32>
    %26 = arith.mulf %5, %21 : vector<8x1xf32>
    %27 = arith.mulf %8, %25 : vector<8x1xf32>
    %28 = arith.subf %27, %26 : vector<8x1xf32>
    %cst_11 = arith.constant 1.000000e+00 : f32
    %29 = vector.broadcast %cst_11 : f32 to vector<8x1xf32>
    %30 = arith.addf %28, %29 : vector<8x1xf32>
    %cst_12 = arith.constant 0.000000e+00 : f32
    %31 = vector.broadcast %cst_12 : f32 to vector<8x1xf32>
    %32 = arith.maximumf %30, %31 : vector<8x1xf32>
    %33 = vector.shape_cast %32 : vector<8x1xf32> to vector<1x8x1xf32>
    %cst_13 = arith.constant dense<0.000000e+00> : vector<1xf32>
    %34 = vector.multi_reduction <add>, %33, %cst_13 [1, 2] : vector<1x8x1xf32> to vector<1xf32>
    %35 = vector.shape_cast %34 : vector<1xf32> to vector<1x1x1xf32>
    %36 = vector.extract %35[0, 0, 0] : f32 from vector<1x1x1xf32>
    %c0_14 = arith.constant 0 : index
    %c0_15 = arith.constant 0 : index
    %37 = memref.load %arg4[%c0_14, %c0_15] : memref<1x1xf32, #tpu.memory_space<smem>>
    memref.store %36, %arg4[%c0_14, %c0_15] : memref<1x1xf32, #tpu.memory_space<smem>>
    return
  }
  func.func @transform_0(%arg0: i32) -> (i32, i32) {
    %c0_i32 = arith.constant 0 : i32
    %c0_i32_0 = arith.constant 0 : i32
    return %arg0, %c0_i32 : i32, i32
  }
  func.func @transform_1(%arg0: i32) -> (i32, i32) {
    %c0_i32 = arith.constant 0 : i32
    %c0_i32_0 = arith.constant 0 : i32
    return %arg0, %c0_i32 : i32, i32
  }
  func.func @transform_2(%arg0: i32) -> (i32, i32) {
    %c0_i32 = arith.constant 0 : i32
    %c0_i32_0 = arith.constant 0 : i32
    return %arg0, %c0_i32 : i32, i32
  }
  func.func @transform_3(%arg0: i32) -> (i32, i32) {
    %c0_i32 = arith.constant 0 : i32
    %c0_i32_0 = arith.constant 0 : i32
    return %arg0, %c0_i32 : i32, i32
  }
}

</mosaic_0001>

<llo_original>
// kernel: tpu_custom_call.1
$region0: #{tpu_custom_call.1}
  #allocation0 [shape = 'u32[]', space=smem, size = 0x4, offset = 0x4, fixed_abs, tag = 'smem constant byte address 0x4 - core index']
  #allocation1 [shape = 'u32[144,128]{1,0:T(1,128)}', space=vmem, size = 0x12000, scoped, tag = 'internal scratch']
  %s0 = inlined_call_operand.hbm [shape: f32[8,32], index: 0, kind: input, shape index: {}]
  %s1 = inlined_call_operand.hbm [shape: f32[8,32], index: 1, kind: input, shape index: {}]
  %s2 = inlined_call_operand.hbm [shape: f32[8,32], index: 2, kind: input, shape index: {}]
  %s3 = inlined_call_operand.hbm [shape: f32[1,1], index: 3, kind: output, shape index: {}]
  %s4 = sld [smem:[#allocation0]]
  $region34: #{tpu_custom_call.1} parent=0
    _
  %s6 = ssub.s32 1, %s4
  %s7 = scalar_select 0, %s6, %s4
  $region1: #{tpu_custom_call.1} parent=0
    #allocation2 [shape = 'u8[4096]{0}', space=vmem, size = 0x1000, scoped, tag = 'input window, operand 0, single buffered']
    #allocation3 [shape = 's32[1]{0}', space=sflag, size = 0x4, scoped, tag = 'scoped memory for tpu_custom_call.1']
    #allocation4 [shape = 's32[1]{0}', space=sflag, size = 0x4, scoped, tag = 'scoped memory for tpu_custom_call.1']
    #allocation5 [shape = 'u8[4096]{0}', space=vmem, size = 0x1000, scoped, tag = 'input window, operand 1, single buffered']
    #allocation6 [shape = 's32[1]{0}', space=sflag, size = 0x4, scoped, tag = 'scoped memory for tpu_custom_call.1']
    #allocation7 [shape = 'u8[4096]{0}', space=vmem, size = 0x1000, scoped, tag = 'input window, operand 2, single buffered']
    #allocation8 [shape = 'u8[512]{0}', space=smem, size = 0x200, scoped, tag = 'output window, operand 0, single buffered']
    %8 = vsyncpa [#allocation3], 0
    %9 = vsyncpa [#allocation6], 0
    %10 = vsyncpa [#allocation4], 0
    // Predicated region
    $region2: #{tpu_custom_call.1} parent=1 // pred_check
      _
    $region3: #{tpu_custom_call.1} parent=1 // pred_check_branch
      %12 = sbr.rel (0) target = $region5
    $region4: #{tpu_custom_call.1} parent=1 // pred_region
      %s14 = ssub.s32 128, 128
      %15 = vsyncadd [#allocation3], %s14
      %s17 = sshll.u32 [#allocation2], 4
      %s18 = int_to_ptr.vmem [resolvable:$true] %s17
      %20 = dma.hbm_to_vmem [thread:$0]  %s0, 128, %s18, [#allocation3]
    $region5: #{tpu_custom_call.1} parent=1 // pred_fallthru
      _
    // Predicated region
    $region6: #{tpu_custom_call.1} parent=1 // pred_check
      _
    $region7: #{tpu_custom_call.1} parent=1 // pred_check_branch
      %22 = sbr.rel (0) target = $region9
    $region8: #{tpu_custom_call.1} parent=1 // pred_region
      %s24 = ssub.s32 128, 128
      %25 = vsyncadd [#allocation6], %s24
      %s27 = sshll.u32 [#allocation5], 4
      %s28 = int_to_ptr.vmem [resolvable:$true] %s27
      %30 = dma.hbm_to_vmem [thread:$0]  %s1, 128, %s28, [#allocation6]
    $region9: #{tpu_custom_call.1} parent=1 // pred_fallthru
      _
    // Predicated region
    $region10: #{tpu_custom_call.1} parent=1 // pred_check
      _
    $region11: #{tpu_custom_call.1} parent=1 // pred_check_branch
      %32 = sbr.rel (0) target = $region13
    $region12: #{tpu_custom_call.1} parent=1 // pred_region
      %s34 = ssub.s32 128, 128
      %35 = vsyncadd [#allocation6], %s34
      %s37 = sshll.u32 [#allocation7], 4
      %s38 = int_to_ptr.vmem [resolvable:$true] %s37
      %40 = dma.hbm_to_vmem [thread:$0]  %s2, 128, %s38, [#allocation6]
    $region13: #{tpu_custom_call.1} parent=1 // pred_fallthru
      _
    // Predicated region
    $region14: #{tpu_custom_call.1} parent=1 // pred_check
      _
    $region15: #{tpu_custom_call.1} parent=1 // pred_check_branch
      %42 = sbr.rel (0) target = $region17
    $region16: #{tpu_custom_call.1} parent=1 // pred_region
      %43 = dma.done [#allocation3], 128
    $region17: #{tpu_custom_call.1} parent=1 // pred_fallthru
      _
    // Predicated region
    $region18: #{tpu_custom_call.1} parent=1 // pred_check
      _
    $region19: #{tpu_custom_call.1} parent=1 // pred_check_branch
      %45 = sbr.rel (0) target = $region21
    $region20: #{tpu_custom_call.1} parent=1 // pred_region
      %46 = dma.done [#allocation6], 128
    $region21: #{tpu_custom_call.1} parent=1 // pred_fallthru
      _
    // Predicated region
    $region22: #{tpu_custom_call.1} parent=1 // pred_check
      _
    $region23: #{tpu_custom_call.1} parent=1 // pred_check_branch
      %48 = sbr.rel (0) target = $region25
    $region24: #{tpu_custom_call.1} parent=1 // pred_region
      %49 = dma.done [#allocation6], 128
    $region25: #{tpu_custom_call.1} parent=1 // pred_fallthru
      _
    %v50 = vld [vmem:[#allocation2] sm:$0xff]
    %v51 = vld [vmem:[#allocation5] sm:$0xff]
    %v52 = vld [vmem:[#allocation7] sm:$0xff]
    %v53 = vmul.f32 %v50, %v51
    %vm54 = vcmask 261120
    %v55 = vsel %vm54, %v53, 0.0
    %56 = vadd.xlane.f32.xlu0 %v55
    %v57 = vpop.xlane.xlu0 %56
    %v58 = vmul.f32 %v50, %v52
    %v59 = vsel %vm54, %v58, 0.0
    %60 = vadd.xlane.f32.xlu0 %v59
    %v61 = vpop.xlane.xlu0 %60
    %v62 = vmul.f32 %v50, %v50
    %v63 = vsel %vm54, %v62, 0.0
    %64 = vadd.xlane.f32.xlu0 %v63
    %v65 = vpop.xlane.xlu0 %64
    %v66 = vmul.f32 %v51, %v51
    %v67 = vsel %vm54, %v66, 0.0
    %68 = vadd.xlane.f32.xlu0 %v67
    %v69 = vpop.xlane.xlu0 %68
    %v70 = vmul.f32 %v52, %v52
    %v71 = vsel %vm54, %v70, 0.0
    %72 = vadd.xlane.f32.xlu0 %v71
    %v73 = vpop.xlane.xlu0 %72
    %v74 = vmul.f32 %v65, %v69
    %v75 = vmax.f32 %v74, 1e-16
    %v76 = vrsqrt.pop %v75
    %v77 = vmul.f32 %v65, %v73
    %v78 = vmax.f32 %v77, 1e-16
    %v79 = vrsqrt.pop %v78
    %v80 = vmul.f32 %v57, %v76
    %v81 = vmul.f32 %v61, %v79
    %v82 = vsub.f32 %v81, %v80
    %v83 = vadd.f32 %v82, 1.0
    %v84 = vmax.f32 %v83, 0.0
    %vm85 = vcmask 7168
    %v86 = vsel %vm85, %v84, 0.0
    %87 = vadd.xlane.f32.xlu0 %v86
    %v88 = vpop.xlane.xlu0 %87
    %v89 = vrot.slane %v88, 4
    %v90 = vadd.f32 %v88, %v89
    %v91 = vrot.slane %v90, 2
    %v92 = vadd.f32 %v90, %v91
    %v93 = vrot.slane %v92, 1
    %v94 = vadd.f32 %v92, %v93
    %s95 = vtos %v94
    %s96 = scalar_lea.smem [#allocation8], 0
    %97 = sst [smem:[%s96]] %s95
    // Predicated region
    $region26: #{tpu_custom_call.1} parent=1 // pred_check
      _
    $region27: #{tpu_custom_call.1} parent=1 // pred_check_branch
      %99 = sbr.rel (0) target = $region29
    $region28: #{tpu_custom_call.1} parent=1 // pred_region
      %s101 = ssub.s32 16, 16
      %102 = vsyncadd [#allocation4], %s101
      %105 = dma.smem_to_hbm [#allocation8], 16, %s3, [#allocation4]
    $region29: #{tpu_custom_call.1} parent=1 // pred_fallthru
      _
    // Predicated region
    $region30: #{tpu_custom_call.1} parent=1 // pred_check
      _
    $region31: #{tpu_custom_call.1} parent=1 // pred_check_branch
      %107 = sbr.rel (0) target = $region33
    $region32: #{tpu_custom_call.1} parent=1 // pred_region
      %108 = dma.done [#allocation4], 16
    $region33: #{tpu_custom_call.1} parent=1 // pred_fallthru
      _
    %109 = sfence
    %110 = vsyncpa [#allocation3], 1
    %111 = vsyncpa [#allocation6], 1
    %112 = vsyncpa [#allocation4], 1

</llo_original>
